<compile_context>
chip_gen: v7x
topology: tpu7x:2x2x1
jax: 0.10.0
libtpu: 0.0.40
codegen_flags: <defaults>
</compile_context>

<pallas_src>
import functools

import jax
import jax.numpy as jnp
import numpy as np
from jax.experimental import pallas as pl
from jax.experimental.pallas import tpu as pltpu


def _round_up(x, m):
    return (x + m - 1) // m * m


def _ceil_div(a, b):
    return -(-a // b)


def critic_head_kernel(x_ref, w1_ref, b1_ref, w2_ref, b2_ref, w3_ref, b3_ref,
                       out_ref, acc_ref, *, d_total, tk):
    # x:(TM, TK) f32   w1:(TK, 256) bf16   w2:(256, 256) bf16
    # w3:(256, 128) bf16 (only column 0 real)   b1/b2:(1,256) f32  b3:(1,128) f32
    k = pl.program_id(1)
    nk = pl.num_programs(1)

    @pl.when(k == 0)
    def _():
        acc_ref[...] = jnp.zeros_like(acc_ref)

    x = x_ref[...]
    if d_total % tk != 0:
        # Last K block overhangs D: zero the tail columns so they contribute
        # nothing (w1 is also zero-padded there). Cheap VPU work, hidden under
        # the x DMA.
        col = jax.lax.broadcasted_iota(jnp.int32, x.shape, 1) + k * tk
        x = jnp.where(col < d_total, x, 0.0)

    # layer 1 partial product: bf16 MXU matmul, f32 accumulation in VMEM
    acc_ref[...] += jnp.dot(x.astype(jnp.bfloat16), w1_ref[...],
                            preferred_element_type=jnp.float32)

    @pl.when(k == nk - 1)
    def _():
        # epilogue: bias + ReLU, layers 2 and 3 (tiny vs. layer 1)
        h1 = jnp.maximum(acc_ref[...] + b1_ref[...], 0.0)
        h2 = jnp.dot(h1.astype(jnp.bfloat16), w2_ref[...],
                     preferred_element_type=jnp.float32)
        h2 = jnp.maximum(h2 + b2_ref[...], 0.0)
        v = jnp.dot(h2.astype(jnp.bfloat16), w3_ref[...],
                    preferred_element_type=jnp.float32)
        out_ref[...] = v + b3_ref[...]


def prepare_params(params, *, tk=2048, single_k_max=4096):
    """One-time weight prep (call once, reuse across forward calls).

    bf16-casts the MXU operands, zero-pads w1 along K to a TK multiple (only
    when K-tiling is engaged) and pads the 1-wide final projection to 128
    lane-dense output columns.
    """
    w1, b1, w2, b2, w3, b3 = params                  # (in, out) layout
    D, H = w1.shape                                  # H = 256
    NO = 128                                         # lane-dense output width

    if D <= single_k_max:
        TK = D                                       # single K step, no pad
    else:
        TK = tk                                      # multiple of 128
    D_pad = _round_up(D, TK)
    nk = D_pad // TK

    w1_b = w1.astype(jnp.bfloat16)
    if D_pad != D:
        w1_b = jnp.zeros((D_pad, H), jnp.bfloat16).at[:D, :].set(w1_b)
    w2_b = w2.astype(jnp.bfloat16)
    w3_p = jnp.zeros((H, NO), jnp.bfloat16).at[:, 0:1].set(w3.astype(jnp.bfloat16))
    b3_p = jnp.zeros((1, NO), jnp.float32).at[:, 0:1].set(b3.astype(jnp.float32))

    return dict(w1=w1_b, b1=b1.astype(jnp.float32), w2=w2_b,
                b2=b2.astype(jnp.float32), w3=w3_p, b3=b3_p,
                d=D, tk=TK, nk=nk, hidden=H, no=NO)


def critic_head_forward(x_nchw, prepped, *, block_b=256):
    """x_nchw: (B, C, H, W) float -> (B, 1) float32."""
    B = x_nchw.shape[0]
    x_flat = x_nchw.reshape(B, -1).astype(jnp.float32)   # torch.flatten(x, 1)

    D, TK, nk = prepped["d"], prepped["tk"], prepped["nk"]
    H, NO = prepped["hidden"], prepped["no"]
    assert x_flat.shape[1] == D, "input feature dim does not match params"

    # Adaptive batch tiling: spread B over ceil(B/block_b) steps, round the
    # tile to a sublane multiple, avoid padded rows for awkward B.
    n_b_steps = _ceil_div(B, block_b)
    TM = _round_up(_ceil_div(B, n_b_steps), 8)
    if TM >= B:
        TM = B                                       # single full-B block
    grid_b = _ceil_div(B, TM)

    # VMEM budget (double-buffered x / w1 tiles + resident small weights +
    # f32 accumulator + epilogue temporaries). v5e's default scoped limit is
    # only 16 MiB, so request explicitly.
    budget = (
        2 * TM * TK * 4          # x tile, f32, double-buffered
        + 2 * TK * H * 2         # w1 tile, bf16, double-buffered
        + 2 * H * H * 2          # w2 resident (bf16)
        + 2 * H * NO * 2         # w3 resident (bf16)
        + 4 * (2 * H + NO) * 4   # biases
        + TM * H * 4             # acc scratch
        + 2 * TM * NO * 4        # output block
        + 3 * TM * H * 4         # h1/h2/v temporaries
    )
    vmem_limit = int(budget) + (8 << 20)             # generous headroom

    kernel = functools.partial(critic_head_kernel, d_total=D, tk=TK)

    out = pl.pallas_call(
        kernel,
        out_shape=jax.ShapeDtypeStruct((B, NO), jnp.float32),
        grid=(grid_b, nk),
        in_specs=[
            pl.BlockSpec((TM, TK), lambda i, k: (i, k)),   # x tile (pipelined)
            pl.BlockSpec((TK, H), lambda i, k: (k, 0)),    # w1 K-slice
            pl.BlockSpec((1, H), lambda i, k: (0, 0)),     # b1 (resident)
            pl.BlockSpec((H, H), lambda i, k: (0, 0)),     # w2 (resident)
            pl.BlockSpec((1, H), lambda i, k: (0, 0)),     # b2 (resident)
            pl.BlockSpec((H, NO), lambda i, k: (0, 0)),    # w3 padded (resident)
            pl.BlockSpec((1, NO), lambda i, k: (0, 0)),    # b3 padded (resident)
        ],
        out_specs=pl.BlockSpec((TM, NO), lambda i, k: (i, 0)),
        scratch_shapes=[pltpu.VMEM((TM, H), jnp.float32)],  # layer-1 accumulator
        compiler_params=pltpu.CompilerParams(
            dimension_semantics=("parallel", "arbitrary"),
            vmem_limit_bytes=vmem_limit),
    )(x_flat, prepped["w1"], prepped["b1"], prepped["w2"], prepped["b2"],
      prepped["w3"], prepped["b3"])

    return out[:, 0:1]


def init_params(key, in_dim, hidden_dim=256):
    """nn.Linear-style init (uniform +-1/sqrt(fan_in)); weights stored (in, out)."""
    ks = jax.random.split(key, 6)

    def lin(kw, kb, fan_in, fan_out):
        bound = 1.0 / np.sqrt(fan_in)
        w = jax.random.uniform(kw, (fan_in, fan_out), jnp.float32, -bound, bound)
        b = jax.random.uniform(kb, (1, fan_out), jnp.float32, -bound, bound)
        return w, b

    w1, b1 = lin(ks[0], ks[1], in_dim, hidden_dim)       # mlp.linear1
    w2, b2 = lin(ks[2], ks[3], hidden_dim, hidden_dim)   # mlp.linear2
    w3, b3 = lin(ks[4], ks[5], hidden_dim, 1)            # cls
    return (w1, b1, w2, b2, w3, b3)


def reference_forward(x_nchw, params):
    """Pure-JAX reference with the same bf16-input / f32-accumulate numerics."""
    B = x_nchw.shape[0]
    x = x_nchw.reshape(B, -1).astype(jnp.float32)
    w1, b1, w2, b2, w3, b3 = params
    h = jnp.dot(x.astype(jnp.bfloat16), w1.astype(jnp.bfloat16),
                preferred_element_type=jnp.float32) + b1
    h = jnp.maximum(h, 0.0)
    h = jnp.dot(h.astype(jnp.bfloat16), w2.astype(jnp.bfloat16),
                preferred_element_type=jnp.float32) + b2
    h = jnp.maximum(h, 0.0)
    return jnp.dot(h.astype(jnp.bfloat16), w3.astype(jnp.bfloat16),
                   preferred_element_type=jnp.float32) + b3


if __name__ == "__main__":
    # criticHead(input_shape=(C, H, W), action_space=...) -> output (B, 1)
    B, C, Hs, Ws = 2, 4, 16, 16
    key = jax.random.PRNGKey(0)
    k_x, k_p = jax.random.split(key)

    x = jax.random.normal(k_x, (B, C, Hs, Ws), dtype=jnp.float32)
    params = init_params(k_p, in_dim=C * Hs * Ws, hidden_dim=256)
    prepped = prepare_params(params)            # one-time weight prep

    value = critic_head_forward(x, prepped)
    value = jax.block_until_ready(value)

    ref = reference_forward(x, params)
    assert value.shape == (B, 1)
    np.testing.assert_allclose(np.asarray(value), np.asarray(ref),
                               rtol=1e-2, atol=1e-2)
    print("KERNEL_OK")
</pallas_src>

<mosaic_0001>
module attributes {stable_mosaic.version = 11 : i64} {
  func.func @critic_head_kernel(%arg0: i32, %arg1: i32, %arg2: memref<2x1024xf32, #tpu.memory_space<vmem>>, %arg3: memref<1024x256xbf16, #tpu.memory_space<vmem>>, %arg4: memref<1x256xf32, #tpu.memory_space<vmem>>, %arg5: memref<256x256xbf16, #tpu.memory_space<vmem>>, %arg6: memref<1x256xf32, #tpu.memory_space<vmem>>, %arg7: memref<256x128xbf16, #tpu.memory_space<vmem>>, %arg8: memref<1x128xf32, #tpu.memory_space<vmem>>, %arg9: memref<2x128xf32, #tpu.memory_space<vmem>>, %arg10: memref<2x256xf32, #tpu.memory_space<vmem>>) attributes {dimension_semantics = [#tpu.dimension_semantics<parallel>, #tpu.dimension_semantics<arbitrary>], iteration_bounds = array<i64: 1, 1>, scalar_prefetch = 0 : i64, scratch_operands = 1 : i64, tpu.core_type = #tpu.core_type<tc>, window_params = [{transform_indices = @transform_0, window_bounds = array<i64: 2, 1024>}, {transform_indices = @transform_1, window_bounds = array<i64: 1024, 256>}, {pipeline_mode = #tpu.pipeline_mode<synchronous>, transform_indices = @transform_2, window_bounds = array<i64: 1, 256>}, {pipeline_mode = #tpu.pipeline_mode<synchronous>, transform_indices = @transform_3, window_bounds = array<i64: 256, 256>}, {pipeline_mode = #tpu.pipeline_mode<synchronous>, transform_indices = @transform_4, window_bounds = array<i64: 1, 256>}, {pipeline_mode = #tpu.pipeline_mode<synchronous>, transform_indices = @transform_5, window_bounds = array<i64: 256, 128>}, {pipeline_mode = #tpu.pipeline_mode<synchronous>, transform_indices = @transform_6, window_bounds = array<i64: 1, 128>}, {transform_indices = @transform_7, window_bounds = array<i64: 2, 128>}]} {
    %c0_i32 = arith.constant 0 : i32
    %0 = arith.cmpi eq, %arg1, %c0_i32 : i32
    %1 = arith.extui %0 : i1 to i32
    %c0_i32_0 = arith.constant 0 : i32
    %2 = arith.cmpi ne, %1, %c0_i32_0 : i32
    scf.if %2 {
      %cst_10 = arith.constant 0.000000e+00 : f32
      %13 = vector.broadcast %cst_10 : f32 to vector<2x256xf32>
      %c0_11 = arith.constant 0 : index
      %c0_12 = arith.constant 0 : index
      %14 = vector.load %arg10[%c0_11, %c0_12] : memref<2x256xf32, #tpu.memory_space<vmem>>, vector<2x256xf32>
      tpu.vector_store %arg10[%c0_11, %c0_12], %13 {strides = array<i32>} : memref<2x256xf32, #tpu.memory_space<vmem>>, vector<2x256xf32>,
    } else {
    }
    %c0 = arith.constant 0 : index
    %c0_1 = arith.constant 0 : index
    %3 = vector.load %arg2[%c0, %c0_1] : memref<2x1024xf32, #tpu.memory_space<vmem>>, vector<2x1024xf32>
    %c0_2 = arith.constant 0 : index
    %c0_3 = arith.constant 0 : index
    %4 = vector.load %arg10[%c0_2, %c0_3] : memref<2x256xf32, #tpu.memory_space<vmem>>, vector<2x256xf32>
    %5 = arith.truncf %3 : vector<2x1024xf32> to vector<2x1024xbf16>
    %c0_4 = arith.constant 0 : index
    %c0_5 = arith.constant 0 : index
    %6 = vector.load %arg3[%c0_4, %c0_5] : memref<1024x256xbf16, #tpu.memory_space<vmem>>, vector<1024x256xbf16>
    %cst = arith.constant dense<0.000000e+00> : vector<2x256xf32>
    %7 = tpu.matmul %5, %6, %cst {dimension_numbers = #tpu.dot_dimension_numbers<[1], [0], [0], [1], [0, 0, 1, 1], [], []>} : vector<2x1024xbf16>, vector<1024x256xbf16>, vector<2x256xf32> -> vector<2x256xf32>
    %8 = arith.addf %4, %7 : vector<2x256xf32>
    %c0_6 = arith.constant 0 : index
    %c0_7 = arith.constant 0 : index
    %9 = vector.load %arg10[%c0_6, %c0_7] : memref<2x256xf32, #tpu.memory_space<vmem>>, vector<2x256xf32>
    tpu.vector_store %arg10[%c0_6, %c0_7], %8 {strides = array<i32>} : memref<2x256xf32, #tpu.memory_space<vmem>>, vector<2x256xf32>,
    %c0_i32_8 = arith.constant 0 : i32
    %10 = arith.cmpi eq, %arg1, %c0_i32_8 : i32
    %11 = arith.extui %10 : i1 to i32
    %c0_i32_9 = arith.constant 0 : i32
    %12 = arith.cmpi ne, %11, %c0_i32_9 : i32
    scf.if %12 {
      %c0_10 = arith.constant 0 : index
      %c0_11 = arith.constant 0 : index
      %13 = vector.load %arg10[%c0_10, %c0_11] : memref<2x256xf32, #tpu.memory_space<vmem>>, vector<2x256xf32>
      %c0_12 = arith.constant 0 : index
      %c0_13 = arith.constant 0 : index
      %14 = vector.load %arg4[%c0_12, %c0_13] : memref<1x256xf32, #tpu.memory_space<vmem>>, vector<1x256xf32>
      %15 = vector.broadcast %14 : vector<1x256xf32> to vector<2x256xf32>
      %16 = arith.addf %13, %15 : vector<2x256xf32>
      %cst_14 = arith.constant 0.000000e+00 : f32
      %17 = vector.broadcast %cst_14 : f32 to vector<2x256xf32>
      %18 = arith.maximumf %16, %17 : vector<2x256xf32>
      %19 = arith.truncf %18 : vector<2x256xf32> to vector<2x256xbf16>
      %c0_15 = arith.constant 0 : index
      %c0_16 = arith.constant 0 : index
      %20 = vector.load %arg5[%c0_15, %c0_16] : memref<256x256xbf16, #tpu.memory_space<vmem>>, vector<256x256xbf16>
      %cst_17 = arith.constant dense<0.000000e+00> : vector<2x256xf32>
      %21 = tpu.matmul %19, %20, %cst_17 {dimension_numbers = #tpu.dot_dimension_numbers<[1], [0], [0], [1], [0, 0, 1, 1], [], []>} : vector<2x256xbf16>, vector<256x256xbf16>, vector<2x256xf32> -> vector<2x256xf32>
      %c0_18 = arith.constant 0 : index
      %c0_19 = arith.constant 0 : index
      %22 = vector.load %arg6[%c0_18, %c0_19] : memref<1x256xf32, #tpu.memory_space<vmem>>, vector<1x256xf32>
      %23 = vector.broadcast %22 : vector<1x256xf32> to vector<2x256xf32>
      %24 = arith.addf %21, %23 : vector<2x256xf32>
      %cst_20 = arith.constant 0.000000e+00 : f32
      %25 = vector.broadcast %cst_20 : f32 to vector<2x256xf32>
      %26 = arith.maximumf %24, %25 : vector<2x256xf32>
      %27 = arith.truncf %26 : vector<2x256xf32> to vector<2x256xbf16>
      %c0_21 = arith.constant 0 : index
      %c0_22 = arith.constant 0 : index
      %28 = vector.load %arg7[%c0_21, %c0_22] : memref<256x128xbf16, #tpu.memory_space<vmem>>, vector<256x128xbf16>
      %cst_23 = arith.constant dense<0.000000e+00> : vector<2x128xf32>
      %29 = tpu.matmul %27, %28, %cst_23 {dimension_numbers = #tpu.dot_dimension_numbers<[1], [0], [0], [1], [0, 0, 1, 1], [], []>} : vector<2x256xbf16>, vector<256x128xbf16>, vector<2x128xf32> -> vector<2x128xf32>
      %c0_24 = arith.constant 0 : index
      %c0_25 = arith.constant 0 : index
      %30 = vector.load %arg8[%c0_24, %c0_25] : memref<1x128xf32, #tpu.memory_space<vmem>>, vector<1x128xf32>
      %31 = vector.broadcast %30 : vector<1x128xf32> to vector<2x128xf32>
      %32 = arith.addf %29, %31 : vector<2x128xf32>
      %c0_26 = arith.constant 0 : index
      %c0_27 = arith.constant 0 : index
      %33 = vector.load %arg9[%c0_26, %c0_27] : memref<2x128xf32, #tpu.memory_space<vmem>>, vector<2x128xf32>
      tpu.vector_store %arg9[%c0_26, %c0_27], %32 {strides = array<i32>} : memref<2x128xf32, #tpu.memory_space<vmem>>, vector<2x128xf32>,
    } else {
    }
    return
  }
  func.func @transform_0(%arg0: i32, %arg1: i32) -> (i32, i32) {
    %c0_i32 = arith.constant 0 : i32
    return %arg0, %arg1 : i32, i32
  }
  func.func @transform_1(%arg0: i32, %arg1: i32) -> (i32, i32) {
    %c0_i32 = arith.constant 0 : i32
    %c0_i32_0 = arith.constant 0 : i32
    return %arg1, %c0_i32 : i32, i32
  }
  func.func @transform_2(%arg0: i32, %arg1: i32) -> (i32, i32) {
    %c0_i32 = arith.constant 0 : i32
    %c0_i32_0 = arith.constant 0 : i32
    %c0_i32_1 = arith.constant 0 : i32
    return %c0_i32, %c0_i32_0 : i32, i32
  }
  func.func @transform_3(%arg0: i32, %arg1: i32) -> (i32, i32) {
    %c0_i32 = arith.constant 0 : i32
    %c0_i32_0 = arith.constant 0 : i32
    %c0_i32_1 = arith.constant 0 : i32
    return %c0_i32, %c0_i32_0 : i32, i32
  }
  func.func @transform_4(%arg0: i32, %arg1: i32) -> (i32, i32) {
    %c0_i32 = arith.constant 0 : i32
    %c0_i32_0 = arith.constant 0 : i32
    %c0_i32_1 = arith.constant 0 : i32
    return %c0_i32, %c0_i32_0 : i32, i32
  }
  func.func @transform_5(%arg0: i32, %arg1: i32) -> (i32, i32) {
    %c0_i32 = arith.constant 0 : i32
    %c0_i32_0 = arith.constant 0 : i32
    %c0_i32_1 = arith.constant 0 : i32
    return %c0_i32, %c0_i32_0 : i32, i32
  }
  func.func @transform_6(%arg0: i32, %arg1: i32) -> (i32, i32) {
    %c0_i32 = arith.constant 0 : i32
    %c0_i32_0 = arith.constant 0 : i32
    %c0_i32_1 = arith.constant 0 : i32
    return %c0_i32, %c0_i32_0 : i32, i32
  }
  func.func @transform_7(%arg0: i32, %arg1: i32) -> (i32, i32) {
    %c0_i32 = arith.constant 0 : i32
    %c0_i32_0 = arith.constant 0 : i32
    return %arg0, %c0_i32 : i32, i32
  }
}

</mosaic_0001>

<llo_original>
// kernel: tpu_custom_call.1
$region0: #{tpu_custom_call.1}
  #allocation0 [shape = 'u32[]', space=smem, size = 0x4, offset = 0x4, fixed_abs, tag = 'smem constant byte address 0x4 - core index']
  #allocation1 [shape = 'u32[144,128]{1,0:T(1,128)}', space=vmem, size = 0x12000, scoped, tag = 'internal scratch']
  #allocation2 [shape = 'f32[2,256]{1,0:T(2,128)}', space=vmem, size = 0x800, scoped, tag = 'scratch operand']
  %s0 = inlined_call_operand.hbm [shape: f32[2,1024], index: 0, kind: input, shape index: {}]
  %s1 = inlined_call_operand.hbm [shape: bf16[1024,256], index: 1, kind: input, shape index: {}]
  %s2 = inlined_call_operand.vmem [shape: f32[1,256], index: 2, kind: input, shape index: {}]
  %s3 = inlined_call_operand.hbm [shape: bf16[256,256], index: 3, kind: input, shape index: {}]
  %s4 = inlined_call_operand.vmem [shape: f32[1,256], index: 4, kind: input, shape index: {}]
  %s5 = inlined_call_operand.hbm [shape: bf16[256,128], index: 5, kind: input, shape index: {}]
  %s6 = inlined_call_operand.vmem [shape: f32[1,128], index: 6, kind: input, shape index: {}]
  %s7 = inlined_call_operand.hbm [shape: f32[2,128], index: 7, kind: output, shape index: {}]
  %s8 = sld [smem:[#allocation0]]
  $region62: #{tpu_custom_call.1} parent=0
    _
  %s10 = ssub.s32 1, %s8
  %s11 = scalar_select 0, %s10, %s8
  $region1: #{tpu_custom_call.1} parent=0
    #allocation3 [shape = 'u8[8192]{0}', space=vmem, size = 0x2000, scoped, tag = 'input window, operand 0, single buffered']
    #allocation4 [shape = 's32[1]{0}', space=sflag, size = 0x4, scoped, tag = 'scoped memory for tpu_custom_call.1']
    #allocation5 [shape = 's32[1]{0}', space=sflag, size = 0x4, scoped, tag = 'scoped memory for tpu_custom_call.1']
    #allocation6 [shape = 'u8[524288]{0}', space=vmem, size = 0x80000, scoped, tag = 'input window, operand 1, single buffered']
    #allocation7 [shape = 's32[1]{0}', space=sflag, size = 0x4, scoped, tag = 'scoped memory for tpu_custom_call.1']
    #allocation8 [shape = 'u8[131072]{0}', space=vmem, size = 0x20000, scoped, tag = 'input window, operand 3, single buffered']
    #allocation9 [shape = 'u8[65536]{0}', space=vmem, size = 0x10000, scoped, tag = 'input window, operand 5, single buffered']
    #allocation10 [shape = 's32[1]{0}', space=sflag, size = 0x4, scoped, tag = 'scoped memory for tpu_custom_call.1']
    #allocation11 [shape = 'u8[1024]{0}', space=vmem, size = 0x400, scoped, tag = 'output window, operand 0, single buffered']
    %12 = vsyncpa [#allocation4], 0
    %13 = vsyncpa [#allocation7], 0
    %14 = vsyncpa [#allocation10], 0
    %15 = vsyncpa [#allocation5], 0
    // Predicated region
    $region2: #{tpu_custom_call.1} parent=1 // pred_check
      _
    $region3: #{tpu_custom_call.1} parent=1 // pred_check_branch
      %17 = sbr.rel (0) target = $region5
    $region4: #{tpu_custom_call.1} parent=1 // pred_region
      %s19 = ssub.s32 256, 256
      %20 = vsyncadd [#allocation4], %s19
      %s22 = sshll.u32 [#allocation3], 4
      %s23 = int_to_ptr.vmem [resolvable:$true] %s22
      %25 = dma.hbm_to_vmem [thread:$0]  %s0, 256, %s23, [#allocation4]
    $region5: #{tpu_custom_call.1} parent=1 // pred_fallthru
      _
    // Predicated region
    $region6: #{tpu_custom_call.1} parent=1 // pred_check
      _
    $region7: #{tpu_custom_call.1} parent=1 // pred_check_branch
      %27 = sbr.rel (0) target = $region9
    $region8: #{tpu_custom_call.1} parent=1 // pred_region
      %s29 = ssub.s32 16384, 16384
      %30 = vsyncadd [#allocation7], %s29
      %s31 = sshll.u32 [#allocation6], 4
      %s32 = int_to_ptr.vmem [resolvable:$true] %s31
      %37 = dma.hbm_to_vmem [thread:$0]  %s1, 16384, %s32, [#allocation7], 128, 128, 8
    $region9: #{tpu_custom_call.1} parent=1 // pred_fallthru
      _
    // Predicated region
    $region10: #{tpu_custom_call.1} parent=1 // pred_check
      _
    $region11: #{tpu_custom_call.1} parent=1 // pred_check_branch
      %39 = sbr.rel (0) target = $region13
    $region12: #{tpu_custom_call.1} parent=1 // pred_region
      _
    $region13: #{tpu_custom_call.1} parent=1 // pred_fallthru
      _
    // Predicated region
    $region14: #{tpu_custom_call.1} parent=1 // pred_check
      _
    $region15: #{tpu_custom_call.1} parent=1 // pred_check_branch
      %41 = sbr.rel (0) target = $region17
    $region16: #{tpu_custom_call.1} parent=1 // pred_region
      %s43 = ssub.s32 4096, 4096
      %44 = vsyncadd [#allocation7], %s43
      %s45 = sshll.u32 [#allocation8], 4
      %s46 = int_to_ptr.vmem [resolvable:$true] %s45
      %51 = dma.hbm_to_vmem [thread:$0]  %s3, 4096, %s46, [#allocation7], 128, 128, 8
    $region17: #{tpu_custom_call.1} parent=1 // pred_fallthru
      _
    // Predicated region
    $region18: #{tpu_custom_call.1} parent=1 // pred_check
      _
    $region19: #{tpu_custom_call.1} parent=1 // pred_check_branch
      %53 = sbr.rel (0) target = $region21
    $region20: #{tpu_custom_call.1} parent=1 // pred_region
      _
    $region21: #{tpu_custom_call.1} parent=1 // pred_fallthru
      _
    // Predicated region
    $region22: #{tpu_custom_call.1} parent=1 // pred_check
      _
    $region23: #{tpu_custom_call.1} parent=1 // pred_check_branch
      %55 = sbr.rel (0) target = $region25
    $region24: #{tpu_custom_call.1} parent=1 // pred_region
      %s57 = ssub.s32 2048, 2048
      %58 = vsyncadd [#allocation10], %s57
      %s59 = sshll.u32 [#allocation9], 4
      %s60 = int_to_ptr.vmem [resolvable:$true] %s59
      %65 = dma.hbm_to_vmem [thread:$0]  %s5, 2048, %s60, [#allocation10], 64, 64, 4
    $region25: #{tpu_custom_call.1} parent=1 // pred_fallthru
      _
    // Predicated region
    $region26: #{tpu_custom_call.1} parent=1 // pred_check
      _
    $region27: #{tpu_custom_call.1} parent=1 // pred_check_branch
      %67 = sbr.rel (0) target = $region29
    $region28: #{tpu_custom_call.1} parent=1 // pred_region
      _
    $region29: #{tpu_custom_call.1} parent=1 // pred_fallthru
      _
    // Predicated region
    $region30: #{tpu_custom_call.1} parent=1 // pred_check
      _
    $region31: #{tpu_custom_call.1} parent=1 // pred_check_branch
      %69 = sbr.rel (0) target = $region33
    $region32: #{tpu_custom_call.1} parent=1 // pred_region
      %70 = dma.done [#allocation4], 256
    $region33: #{tpu_custom_call.1} parent=1 // pred_fallthru
      _
    // Predicated region
    $region34: #{tpu_custom_call.1} parent=1 // pred_check
      _
    $region35: #{tpu_custom_call.1} parent=1 // pred_check_branch
      %72 = sbr.rel (0) target = $region37
    $region36: #{tpu_custom_call.1} parent=1 // pred_region
      %73 = dma.done [#allocation7], 16384
    $region37: #{tpu_custom_call.1} parent=1 // pred_fallthru
      _
    // Predicated region
    $region38: #{tpu_custom_call.1} parent=1 // pred_check
      _
    $region39: #{tpu_custom_call.1} parent=1 // pred_check_branch
      %75 = sbr.rel (0) target = $region41
    $region40: #{tpu_custom_call.1} parent=1 // pred_region
      %76 = dma.done [#allocation7], 4096
    $region41: #{tpu_custom_call.1} parent=1 // pred_fallthru
      _
    // Predicated region
    $region42: #{tpu_custom_call.1} parent=1 // pred_check
      _
    $region43: #{tpu_custom_call.1} parent=1 // pred_check_branch
      %78 = sbr.rel (0) target = $region45
    $region44: #{tpu_custom_call.1} parent=1 // pred_region
      %79 = dma.done [#allocation10], 2048
    $region45: #{tpu_custom_call.1} parent=1 // pred_fallthru
      _
    %p81 = scmp.eq.s32.totalorder 0, 0
    // Predicated region
    $region46: #{tpu_custom_call.1} parent=1 // pred_check
      %p82 = pneg %p81
    $region47: #{tpu_custom_call.1} parent=1 // pred_check_branch
      %84 = sbr.rel (%p82) target = $region49
    $region48: #{tpu_custom_call.1} parent=1 // pred_region
      %85 = vst [vmem:[#allocation2] sm:$0xf] 0.0
    $region49: #{tpu_custom_call.1} parent=1 // pred_fallthru
      _
    %v86 = vld [vmem:[#allocation3] sm:$0xff]
    %v87 = vld [vmem:[#allocation3 + $0x8] sm:$0xff]
    %v88 = vld [vmem:[#allocation2] sm:$0xf]
    %v91 = vcombine.high %v86, %v86
    %v93 = vunpack.c.l.s4 1983009808
    %v94 = vunpack.c.0.s8 %v93
    %v95 = vlaneseq
    %v96 = vshrl.u32 %v95, 7
    %v97 = vsub.s32 %v94, %v96
    %v98 = vrot.slane %v86, %v97
    %v100 = vunpack.c.l.s4 1983009808
    %v101 = vunpack.c.0.s8 %v100
    %v102 = vlaneseq
    %v103 = vshrl.u32 %v102, 7
    %v104 = vsub.s32 %v101, %v103
    %v105 = vrot.slane %v91, %v104
    %v106 = vcombine.high %v98, %v98
    %v107 = vcombine.high %v105, %v105
    %v108 = vcombine.high %v87, %v87
    %v110 = vunpack.c.l.s4 1983009808
    %v111 = vunpack.c.0.s8 %v110
    %v112 = vlaneseq
    %v113 = vshrl.u32 %v112, 7
    %v114 = vsub.s32 %v111, %v113
    %v115 = vrot.slane %v87, %v114
    %v117 = vunpack.c.l.s4 1983009808
    %v118 = vunpack.c.0.s8 %v117
    %v119 = vlaneseq
    %v120 = vshrl.u32 %v119, 7
    %v121 = vsub.s32 %v118, %v120
    %v122 = vrot.slane %v108, %v121
    %v123 = vcombine.high %v115, %v115
    %v124 = vcombine.high %v122, %v122
    %v133 = vpack.c.bf16 %v98, %v98
    %v134 = vpack.c.bf16 %v106, %v106
    %v135 = vpack.c.bf16 %v105, %v105
    %v136 = vpack.c.bf16 %v107, %v107
    %v137 = vpack.c.bf16 %v115, %v115
    %v138 = vpack.c.bf16 %v123, %v123
    %v139 = vpack.c.bf16 %v122, %v122
    %v140 = vpack.c.bf16 %v124, %v124
    %v141 = vld [vmem:[#allocation6] sm:$0xff]
    %v142 = vld [vmem:[#allocation6 + $0x8] sm:$0xff]
    %v143 = vld [vmem:[#allocation6 + $0x10] sm:$0xff]
    %v144 = vld [vmem:[#allocation6 + $0x18] sm:$0xff]
    %v145 = vld [vmem:[#allocation6 + $0x20] sm:$0xff]
    %v146 = vld [vmem:[#allocation6 + $0x28] sm:$0xff]
    %v147 = vld [vmem:[#allocation6 + $0x30] sm:$0xff]
    %v148 = vld [vmem:[#allocation6 + $0x38] sm:$0xff]
    %v149 = vld [vmem:[#allocation6 + $0x40] sm:$0xff]
    %v150 = vld [vmem:[#allocation6 + $0x48] sm:$0xff]
    %v151 = vld [vmem:[#allocation6 + $0x50] sm:$0xff]
    %v152 = vld [vmem:[#allocation6 + $0x58] sm:$0xff]
    %v153 = vld [vmem:[#allocation6 + $0x60] sm:$0xff]
    %v154 = vld [vmem:[#allocation6 + $0x68] sm:$0xff]
    %v155 = vld [vmem:[#allocation6 + $0x70] sm:$0xff]
    %v156 = vld [vmem:[#allocation6 + $0x78] sm:$0xff]
    %v157 = vld [vmem:[#allocation6 + $0x80] sm:$0xff]
    %v158 = vld [vmem:[#allocation6 + $0x88] sm:$0xff]
    %v159 = vld [vmem:[#allocation6 + $0x90] sm:$0xff]
    %v160 = vld [vmem:[#allocation6 + $0x98] sm:$0xff]
    %v161 = vld [vmem:[#allocation6 + $0xa0] sm:$0xff]
    %v162 = vld [vmem:[#allocation6 + $0xa8] sm:$0xff]
    %v163 = vld [vmem:[#allocation6 + $0xb0] sm:$0xff]
    %v164 = vld [vmem:[#allocation6 + $0xb8] sm:$0xff]
    %v165 = vld [vmem:[#allocation6 + $0xc0] sm:$0xff]
    %v166 = vld [vmem:[#allocation6 + $0xc8] sm:$0xff]
    %v167 = vld [vmem:[#allocation6 + $0xd0] sm:$0xff]
    %v168 = vld [vmem:[#allocation6 + $0xd8] sm:$0xff]
    %v169 = vld [vmem:[#allocation6 + $0xe0] sm:$0xff]
    %v170 = vld [vmem:[#allocation6 + $0xe8] sm:$0xff]
    %v171 = vld [vmem:[#allocation6 + $0xf0] sm:$0xff]
    %v172 = vld [vmem:[#allocation6 + $0xf8] sm:$0xff]
    %v173 = vld [vmem:[#allocation6 + $0x100] sm:$0xff]
    %v174 = vld [vmem:[#allocation6 + $0x108] sm:$0xff]
    %v175 = vld [vmem:[#allocation6 + $0x110] sm:$0xff]
    %v176 = vld [vmem:[#allocation6 + $0x118] sm:$0xff]
    %v177 = vld [vmem:[#allocation6 + $0x120] sm:$0xff]
    %v178 = vld [vmem:[#allocation6 + $0x128] sm:$0xff]
    %v179 = vld [vmem:[#allocation6 + $0x130] sm:$0xff]
    %v180 = vld [vmem:[#allocation6 + $0x138] sm:$0xff]
    %v181 = vld [vmem:[#allocation6 + $0x140] sm:$0xff]
    %v182 = vld [vmem:[#allocation6 + $0x148] sm:$0xff]
    %v183 = vld [vmem:[#allocation6 + $0x150] sm:$0xff]
    %v184 = vld [vmem:[#allocation6 + $0x158] sm:$0xff]
    %v185 = vld [vmem:[#allocation6 + $0x160] sm:$0xff]
    %v186 = vld [vmem:[#allocation6 + $0x168] sm:$0xff]
    %v187 = vld [vmem:[#allocation6 + $0x170] sm:$0xff]
    %v188 = vld [vmem:[#allocation6 + $0x178] sm:$0xff]
    %v189 = vld [vmem:[#allocation6 + $0x180] sm:$0xff]
    %v190 = vld [vmem:[#allocation6 + $0x188] sm:$0xff]
    %v191 = vld [vmem:[#allocation6 + $0x190] sm:$0xff]
    %v192 = vld [vmem:[#allocation6 + $0x198] sm:$0xff]
    %v193 = vld [vmem:[#allocation6 + $0x1a0] sm:$0xff]
    %v194 = vld [vmem:[#allocation6 + $0x1a8] sm:$0xff]
    %v195 = vld [vmem:[#allocation6 + $0x1b0] sm:$0xff]
    %v196 = vld [vmem:[#allocation6 + $0x1b8] sm:$0xff]
    %v197 = vld [vmem:[#allocation6 + $0x1c0] sm:$0xff]
    %v198 = vld [vmem:[#allocation6 + $0x1c8] sm:$0xff]
    %v199 = vld [vmem:[#allocation6 + $0x1d0] sm:$0xff]
    %v200 = vld [vmem:[#allocation6 + $0x1d8] sm:$0xff]
    %v201 = vld [vmem:[#allocation6 + $0x1e0] sm:$0xff]
    %v202 = vld [vmem:[#allocation6 + $0x1e8] sm:$0xff]
    %v203 = vld [vmem:[#allocation6 + $0x1f0] sm:$0xff]
    %v204 = vld [vmem:[#allocation6 + $0x1f8] sm:$0xff]
    %v205 = vld [vmem:[#allocation6 + $0x200] sm:$0xff]
    %v206 = vld [vmem:[#allocation6 + $0x208] sm:$0xff]
    %v207 = vld [vmem:[#allocation6 + $0x210] sm:$0xff]
    %v208 = vld [vmem:[#allocation6 + $0x218] sm:$0xff]
    %v209 = vld [vmem:[#allocation6 + $0x220] sm:$0xff]
    %v210 = vld [vmem:[#allocation6 + $0x228] sm:$0xff]
    %v211 = vld [vmem:[#allocation6 + $0x230] sm:$0xff]
    %v212 = vld [vmem:[#allocation6 + $0x238] sm:$0xff]
    %v213 = vld [vmem:[#allocation6 + $0x240] sm:$0xff]
    %v214 = vld [vmem:[#allocation6 + $0x248] sm:$0xff]
    %v215 = vld [vmem:[#allocation6 + $0x250] sm:$0xff]
    %v216 = vld [vmem:[#allocation6 + $0x258] sm:$0xff]
    %v217 = vld [vmem:[#allocation6 + $0x260] sm:$0xff]
    %v218 = vld [vmem:[#allocation6 + $0x268] sm:$0xff]
    %v219 = vld [vmem:[#allocation6 + $0x270] sm:$0xff]
    %v220 = vld [vmem:[#allocation6 + $0x278] sm:$0xff]
    %v221 = vld [vmem:[#allocation6 + $0x280] sm:$0xff]
    %v222 = vld [vmem:[#allocation6 + $0x288] sm:$0xff]
    %v223 = vld [vmem:[#allocation6 + $0x290] sm:$0xff]
    %v224 = vld [vmem:[#allocation6 + $0x298] sm:$0xff]
    %v225 = vld [vmem:[#allocation6 + $0x2a0] sm:$0xff]
    %v226 = vld [vmem:[#allocation6 + $0x2a8] sm:$0xff]
    %v227 = vld [vmem:[#allocation6 + $0x2b0] sm:$0xff]
    %v228 = vld [vmem:[#allocation6 + $0x2b8] sm:$0xff]
    %v229 = vld [vmem:[#allocation6 + $0x2c0] sm:$0xff]
    %v230 = vld [vmem:[#allocation6 + $0x2c8] sm:$0xff]
    %v231 = vld [vmem:[#allocation6 + $0x2d0] sm:$0xff]
    %v232 = vld [vmem:[#allocation6 + $0x2d8] sm:$0xff]
    %v233 = vld [vmem:[#allocation6 + $0x2e0] sm:$0xff]
    %v234 = vld [vmem:[#allocation6 + $0x2e8] sm:$0xff]
    %v235 = vld [vmem:[#allocation6 + $0x2f0] sm:$0xff]
    %v236 = vld [vmem:[#allocation6 + $0x2f8] sm:$0xff]
    %v237 = vld [vmem:[#allocation6 + $0x300] sm:$0xff]
    %v238 = vld [vmem:[#allocation6 + $0x308] sm:$0xff]
    %v239 = vld [vmem:[#allocation6 + $0x310] sm:$0xff]
    %v240 = vld [vmem:[#allocation6 + $0x318] sm:$0xff]
    %v241 = vld [vmem:[#allocation6 + $0x320] sm:$0xff]
    %v242 = vld [vmem:[#allocation6 + $0x328] sm:$0xff]
    %v243 = vld [vmem:[#allocation6 + $0x330] sm:$0xff]
    %v244 = vld [vmem:[#allocation6 + $0x338] sm:$0xff]
    %v245 = vld [vmem:[#allocation6 + $0x340] sm:$0xff]
    %v246 = vld [vmem:[#allocation6 + $0x348] sm:$0xff]
    %v247 = vld [vmem:[#allocation6 + $0x350] sm:$0xff]
    %v248 = vld [vmem:[#allocation6 + $0x358] sm:$0xff]
    %v249 = vld [vmem:[#allocation6 + $0x360] sm:$0xff]
    %v250 = vld [vmem:[#allocation6 + $0x368] sm:$0xff]
    %v251 = vld [vmem:[#allocation6 + $0x370] sm:$0xff]
    %v252 = vld [vmem:[#allocation6 + $0x378] sm:$0xff]
    %v253 = vld [vmem:[#allocation6 + $0x380] sm:$0xff]
    %v254 = vld [vmem:[#allocation6 + $0x388] sm:$0xff]
    %v255 = vld [vmem:[#allocation6 + $0x390] sm:$0xff]
    %v256 = vld [vmem:[#allocation6 + $0x398] sm:$0xff]
    %v257 = vld [vmem:[#allocation6 + $0x3a0] sm:$0xff]
    %v258 = vld [vmem:[#allocation6 + $0x3a8] sm:$0xff]
    %v259 = vld [vmem:[#allocation6 + $0x3b0] sm:$0xff]
    %v260 = vld [vmem:[#allocation6 + $0x3b8] sm:$0xff]
    %v261 = vld [vmem:[#allocation6 + $0x3c0] sm:$0xff]
    %v262 = vld [vmem:[#allocation6 + $0x3c8] sm:$0xff]
    %v263 = vld [vmem:[#allocation6 + $0x3d0] sm:$0xff]
    %v264 = vld [vmem:[#allocation6 + $0x3d8] sm:$0xff]
    %v265 = vld [vmem:[#allocation6 + $0x3e0] sm:$0xff]
    %v266 = vld [vmem:[#allocation6 + $0x3e8] sm:$0xff]
    %v267 = vld [vmem:[#allocation6 + $0x3f0] sm:$0xff]
    %v268 = vld [vmem:[#allocation6 + $0x3f8] sm:$0xff]
    %v397 = vunpack.c.l.b16 %v141
    %v398 = vunpack.c.h.b16 %v141
    %v399 = vunpack.c.l.b16 %v142
    %v400 = vunpack.c.h.b16 %v142
    %v401 = vunpack.c.l.b16 %v143
    %v402 = vunpack.c.h.b16 %v143
    %v403 = vunpack.c.l.b16 %v144
    %v404 = vunpack.c.h.b16 %v144
    %v405 = vunpack.c.l.b16 %v145
    %v406 = vunpack.c.h.b16 %v145
    %v407 = vunpack.c.l.b16 %v146
    %v408 = vunpack.c.h.b16 %v146
    %v409 = vunpack.c.l.b16 %v147
    %v410 = vunpack.c.h.b16 %v147
    %v411 = vunpack.c.l.b16 %v148
    %v412 = vunpack.c.h.b16 %v148
    %v413 = vunpack.c.l.b16 %v149
    %v414 = vunpack.c.h.b16 %v149
    %v415 = vunpack.c.l.b16 %v150
    %v416 = vunpack.c.h.b16 %v150
    %v417 = vunpack.c.l.b16 %v151
    %v418 = vunpack.c.h.b16 %v151
    %v419 = vunpack.c.l.b16 %v152
    %v420 = vunpack.c.h.b16 %v152
    %v421 = vunpack.c.l.b16 %v153
    %v422 = vunpack.c.h.b16 %v153
    %v423 = vunpack.c.l.b16 %v154
    %v424 = vunpack.c.h.b16 %v154
    %v425 = vunpack.c.l.b16 %v155
    %v426 = vunpack.c.h.b16 %v155
    %v427 = vunpack.c.l.b16 %v156
    %v428 = vunpack.c.h.b16 %v156
    %v429 = vunpack.c.l.b16 %v157
    %v430 = vunpack.c.h.b16 %v157
    %v431 = vunpack.c.l.b16 %v158
    %v432 = vunpack.c.h.b16 %v158
    %v433 = vunpack.c.l.b16 %v159
    %v434 = vunpack.c.h.b16 %v159
    %v435 = vunpack.c.l.b16 %v160
    %v436 = vunpack.c.h.b16 %v160
    %v437 = vunpack.c.l.b16 %v161
    %v438 = vunpack.c.h.b16 %v161
    %v439 = vunpack.c.l.b16 %v162
    %v440 = vunpack.c.h.b16 %v162
    %v441 = vunpack.c.l.b16 %v163
    %v442 = vunpack.c.h.b16 %v163
    %v443 = vunpack.c.l.b16 %v164
    %v444 = vunpack.c.h.b16 %v164
    %v445 = vunpack.c.l.b16 %v165
    %v446 = vunpack.c.h.b16 %v165
    %v447 = vunpack.c.l.b16 %v166
    %v448 = vunpack.c.h.b16 %v166
    %v449 = vunpack.c.l.b16 %v167
    %v450 = vunpack.c.h.b16 %v167
    %v451 = vunpack.c.l.b16 %v168
    %v452 = vunpack.c.h.b16 %v168
    %v453 = vunpack.c.l.b16 %v169
    %v454 = vunpack.c.h.b16 %v169
    %v455 = vunpack.c.l.b16 %v170
    %v456 = vunpack.c.h.b16 %v170
    %v457 = vunpack.c.l.b16 %v171
    %v458 = vunpack.c.h.b16 %v171
    %v459 = vunpack.c.l.b16 %v172
    %v460 = vunpack.c.h.b16 %v172
    %v461 = vunpack.c.l.b16 %v173
    %v462 = vunpack.c.h.b16 %v173
    %v463 = vunpack.c.l.b16 %v174
    %v464 = vunpack.c.h.b16 %v174
    %v465 = vunpack.c.l.b16 %v175
    %v466 = vunpack.c.h.b16 %v175
    %v467 = vunpack.c.l.b16 %v176
    %v468 = vunpack.c.h.b16 %v176
    %v469 = vunpack.c.l.b16 %v177
    %v470 = vunpack.c.h.b16 %v177
    %v471 = vunpack.c.l.b16 %v178
    %v472 = vunpack.c.h.b16 %v178
    %v473 = vunpack.c.l.b16 %v179
    %v474 = vunpack.c.h.b16 %v179
    %v475 = vunpack.c.l.b16 %v180
    %v476 = vunpack.c.h.b16 %v180
    %v477 = vunpack.c.l.b16 %v181
    %v478 = vunpack.c.h.b16 %v181
    %v479 = vunpack.c.l.b16 %v182
    %v480 = vunpack.c.h.b16 %v182
    %v481 = vunpack.c.l.b16 %v183
    %v482 = vunpack.c.h.b16 %v183
    %v483 = vunpack.c.l.b16 %v184
    %v484 = vunpack.c.h.b16 %v184
    %v485 = vunpack.c.l.b16 %v185
    %v486 = vunpack.c.h.b16 %v185
    %v487 = vunpack.c.l.b16 %v186
    %v488 = vunpack.c.h.b16 %v186
    %v489 = vunpack.c.l.b16 %v187
    %v490 = vunpack.c.h.b16 %v187
    %v491 = vunpack.c.l.b16 %v188
    %v492 = vunpack.c.h.b16 %v188
    %v493 = vunpack.c.l.b16 %v189
    %v494 = vunpack.c.h.b16 %v189
    %v495 = vunpack.c.l.b16 %v190
    %v496 = vunpack.c.h.b16 %v190
    %v497 = vunpack.c.l.b16 %v191
    %v498 = vunpack.c.h.b16 %v191
    %v499 = vunpack.c.l.b16 %v192
    %v500 = vunpack.c.h.b16 %v192
    %v501 = vunpack.c.l.b16 %v193
    %v502 = vunpack.c.h.b16 %v193
    %v503 = vunpack.c.l.b16 %v194
    %v504 = vunpack.c.h.b16 %v194
    %v505 = vunpack.c.l.b16 %v195
    %v506 = vunpack.c.h.b16 %v195
    %v507 = vunpack.c.l.b16 %v196
    %v508 = vunpack.c.h.b16 %v196
    %v509 = vunpack.c.l.b16 %v197
    %v510 = vunpack.c.h.b16 %v197
    %v511 = vunpack.c.l.b16 %v198
    %v512 = vunpack.c.h.b16 %v198
    %v513 = vunpack.c.l.b16 %v199
    %v514 = vunpack.c.h.b16 %v199
    %v515 = vunpack.c.l.b16 %v200
    %v516 = vunpack.c.h.b16 %v200
    %v517 = vunpack.c.l.b16 %v201
    %v518 = vunpack.c.h.b16 %v201
    %v519 = vunpack.c.l.b16 %v202
    %v520 = vunpack.c.h.b16 %v202
    %v521 = vunpack.c.l.b16 %v203
    %v522 = vunpack.c.h.b16 %v203
    %v523 = vunpack.c.l.b16 %v204
    %v524 = vunpack.c.h.b16 %v204
    %v525 = vunpack.c.l.b16 %v205
    %v526 = vunpack.c.h.b16 %v205
    %v527 = vunpack.c.l.b16 %v206
    %v528 = vunpack.c.h.b16 %v206
    %v529 = vunpack.c.l.b16 %v207
    %v530 = vunpack.c.h.b16 %v207
    %v531 = vunpack.c.l.b16 %v208
    %v532 = vunpack.c.h.b16 %v208
    %v533 = vunpack.c.l.b16 %v209
    %v534 = vunpack.c.h.b16 %v209
    %v535 = vunpack.c.l.b16 %v210
    %v536 = vunpack.c.h.b16 %v210
    %v537 = vunpack.c.l.b16 %v211
    %v538 = vunpack.c.h.b16 %v211
    %v539 = vunpack.c.l.b16 %v212
    %v540 = vunpack.c.h.b16 %v212
    %v541 = vunpack.c.l.b16 %v213
    %v542 = vunpack.c.h.b16 %v213
    %v543 = vunpack.c.l.b16 %v214
    %v544 = vunpack.c.h.b16 %v214
    %v545 = vunpack.c.l.b16 %v215
    %v546 = vunpack.c.h.b16 %v215
    %v547 = vunpack.c.l.b16 %v216
    %v548 = vunpack.c.h.b16 %v216
    %v549 = vunpack.c.l.b16 %v217
    %v550 = vunpack.c.h.b16 %v217
    %v551 = vunpack.c.l.b16 %v218
    %v552 = vunpack.c.h.b16 %v218
    %v553 = vunpack.c.l.b16 %v219
    %v554 = vunpack.c.h.b16 %v219
    %v555 = vunpack.c.l.b16 %v220
    %v556 = vunpack.c.h.b16 %v220
    %v557 = vunpack.c.l.b16 %v221
    %v558 = vunpack.c.h.b16 %v221
    %v559 = vunpack.c.l.b16 %v222
    %v560 = vunpack.c.h.b16 %v222
    %v561 = vunpack.c.l.b16 %v223
    %v562 = vunpack.c.h.b16 %v223
    %v563 = vunpack.c.l.b16 %v224
    %v564 = vunpack.c.h.b16 %v224
    %v565 = vunpack.c.l.b16 %v225
    %v566 = vunpack.c.h.b16 %v225
    %v567 = vunpack.c.l.b16 %v226
    %v568 = vunpack.c.h.b16 %v226
    %v569 = vunpack.c.l.b16 %v227
    %v570 = vunpack.c.h.b16 %v227
    %v571 = vunpack.c.l.b16 %v228
    %v572 = vunpack.c.h.b16 %v228
    %v573 = vunpack.c.l.b16 %v229
    %v574 = vunpack.c.h.b16 %v229
    %v575 = vunpack.c.l.b16 %v230
    %v576 = vunpack.c.h.b16 %v230
    %v577 = vunpack.c.l.b16 %v231
    %v578 = vunpack.c.h.b16 %v231
    %v579 = vunpack.c.l.b16 %v232
    %v580 = vunpack.c.h.b16 %v232
    %v581 = vunpack.c.l.b16 %v233
    %v582 = vunpack.c.h.b16 %v233
    %v583 = vunpack.c.l.b16 %v234
    %v584 = vunpack.c.h.b16 %v234
    %v585 = vunpack.c.l.b16 %v235
    %v586 = vunpack.c.h.b16 %v235
    %v587 = vunpack.c.l.b16 %v236
    %v588 = vunpack.c.h.b16 %v236
    %v589 = vunpack.c.l.b16 %v237
    %v590 = vunpack.c.h.b16 %v237
    %v591 = vunpack.c.l.b16 %v238
    %v592 = vunpack.c.h.b16 %v238
    %v593 = vunpack.c.l.b16 %v239
    %v594 = vunpack.c.h.b16 %v239
    %v595 = vunpack.c.l.b16 %v240
    %v596 = vunpack.c.h.b16 %v240
    %v597 = vunpack.c.l.b16 %v241
    %v598 = vunpack.c.h.b16 %v241
    %v599 = vunpack.c.l.b16 %v242
    %v600 = vunpack.c.h.b16 %v242
    %v601 = vunpack.c.l.b16 %v243
    %v602 = vunpack.c.h.b16 %v243
    %v603 = vunpack.c.l.b16 %v244
    %v604 = vunpack.c.h.b16 %v244
    %v605 = vunpack.c.l.b16 %v245
    %v606 = vunpack.c.h.b16 %v245
    %v607 = vunpack.c.l.b16 %v246
    %v608 = vunpack.c.h.b16 %v246
    %v609 = vunpack.c.l.b16 %v247
    %v610 = vunpack.c.h.b16 %v247
    %v611 = vunpack.c.l.b16 %v248
    %v612 = vunpack.c.h.b16 %v248
    %v613 = vunpack.c.l.b16 %v249
    %v614 = vunpack.c.h.b16 %v249
    %v615 = vunpack.c.l.b16 %v250
    %v616 = vunpack.c.h.b16 %v250
    %v617 = vunpack.c.l.b16 %v251
    %v618 = vunpack.c.h.b16 %v251
    %v619 = vunpack.c.l.b16 %v252
    %v620 = vunpack.c.h.b16 %v252
    %v621 = vunpack.c.l.b16 %v253
    %v622 = vunpack.c.h.b16 %v253
    %v623 = vunpack.c.l.b16 %v254
    %v624 = vunpack.c.h.b16 %v254
    %v625 = vunpack.c.l.b16 %v255
    %v626 = vunpack.c.h.b16 %v255
    %v627 = vunpack.c.l.b16 %v256
    %v628 = vunpack.c.h.b16 %v256
    %v629 = vunpack.c.l.b16 %v257
    %v630 = vunpack.c.h.b16 %v257
    %v631 = vunpack.c.l.b16 %v258
    %v632 = vunpack.c.h.b16 %v258
    %v633 = vunpack.c.l.b16 %v259
    %v634 = vunpack.c.h.b16 %v259
    %v635 = vunpack.c.l.b16 %v260
    %v636 = vunpack.c.h.b16 %v260
    %v637 = vunpack.c.l.b16 %v261
    %v638 = vunpack.c.h.b16 %v261
    %v639 = vunpack.c.l.b16 %v262
    %v640 = vunpack.c.h.b16 %v262
    %v641 = vunpack.c.l.b16 %v263
    %v642 = vunpack.c.h.b16 %v263
    %v643 = vunpack.c.l.b16 %v264
    %v644 = vunpack.c.h.b16 %v264
    %v645 = vunpack.c.l.b16 %v265
    %v646 = vunpack.c.h.b16 %v265
    %v647 = vunpack.c.l.b16 %v266
    %v648 = vunpack.c.h.b16 %v266
    %v649 = vunpack.c.l.b16 %v267
    %v650 = vunpack.c.h.b16 %v267
    %v651 = vunpack.c.l.b16 %v268
    %v652 = vunpack.c.h.b16 %v268
    %v653 = vpack.c.b16 %v399, %v397
    %v654 = vpack.c.b16 %v400, %v398
    %v655 = vpack.c.b16 %v403, %v401
    %v656 = vpack.c.b16 %v404, %v402
    %v657 = vpack.c.b16 %v407, %v405
    %v658 = vpack.c.b16 %v408, %v406
    %v659 = vpack.c.b16 %v411, %v409
    %v660 = vpack.c.b16 %v412, %v410
    %v661 = vpack.c.b16 %v415, %v413
    %v662 = vpack.c.b16 %v416, %v414
    %v663 = vpack.c.b16 %v419, %v417
    %v664 = vpack.c.b16 %v420, %v418
    %v665 = vpack.c.b16 %v423, %v421
    %v666 = vpack.c.b16 %v424, %v422
    %v667 = vpack.c.b16 %v427, %v425
    %v668 = vpack.c.b16 %v428, %v426
    %v669 = vpack.c.b16 %v431, %v429
    %v670 = vpack.c.b16 %v432, %v430
    %v671 = vpack.c.b16 %v435, %v433
    %v672 = vpack.c.b16 %v436, %v434
    %v673 = vpack.c.b16 %v439, %v437
    %v674 = vpack.c.b16 %v440, %v438
    %v675 = vpack.c.b16 %v443, %v441
    %v676 = vpack.c.b16 %v444, %v442
    %v677 = vpack.c.b16 %v447, %v445
    %v678 = vpack.c.b16 %v448, %v446
    %v679 = vpack.c.b16 %v451, %v449
    %v680 = vpack.c.b16 %v452, %v450
    %v681 = vpack.c.b16 %v455, %v453
    %v682 = vpack.c.b16 %v456, %v454
    %v683 = vpack.c.b16 %v459, %v457
    %v684 = vpack.c.b16 %v460, %v458
    %v685 = vpack.c.b16 %v463, %v461
    %v686 = vpack.c.b16 %v464, %v462
    %v687 = vpack.c.b16 %v467, %v465
    %v688 = vpack.c.b16 %v468, %v466
    %v689 = vpack.c.b16 %v471, %v469
    %v690 = vpack.c.b16 %v472, %v470
    %v691 = vpack.c.b16 %v475, %v473
    %v692 = vpack.c.b16 %v476, %v474
    %v693 = vpack.c.b16 %v479, %v477
    %v694 = vpack.c.b16 %v480, %v478
    %v695 = vpack.c.b16 %v483, %v481
    %v696 = vpack.c.b16 %v484, %v482
    %v697 = vpack.c.b16 %v487, %v485
    %v698 = vpack.c.b16 %v488, %v486
    %v699 = vpack.c.b16 %v491, %v489
    %v700 = vpack.c.b16 %v492, %v490
    %v701 = vpack.c.b16 %v495, %v493
    %v702 = vpack.c.b16 %v496, %v494
    %v703 = vpack.c.b16 %v499, %v497
    %v704 = vpack.c.b16 %v500, %v498
    %v705 = vpack.c.b16 %v503, %v501
    %v706 = vpack.c.b16 %v504, %v502
    %v707 = vpack.c.b16 %v507, %v505
    %v708 = vpack.c.b16 %v508, %v506
    %v709 = vpack.c.b16 %v511, %v509
    %v710 = vpack.c.b16 %v512, %v510
    %v711 = vpack.c.b16 %v515, %v513
    %v712 = vpack.c.b16 %v516, %v514
    %v713 = vpack.c.b16 %v519, %v517
    %v714 = vpack.c.b16 %v520, %v518
    %v715 = vpack.c.b16 %v523, %v521
    %v716 = vpack.c.b16 %v524, %v522
    %v717 = vpack.c.b16 %v527, %v525
    %v718 = vpack.c.b16 %v528, %v526
    %v719 = vpack.c.b16 %v531, %v529
    %v720 = vpack.c.b16 %v532, %v530
    %v721 = vpack.c.b16 %v535, %v533
    %v722 = vpack.c.b16 %v536, %v534
    %v723 = vpack.c.b16 %v539, %v537
    %v724 = vpack.c.b16 %v540, %v538
    %v725 = vpack.c.b16 %v543, %v541
    %v726 = vpack.c.b16 %v544, %v542
    %v727 = vpack.c.b16 %v547, %v545
    %v728 = vpack.c.b16 %v548, %v546
    %v729 = vpack.c.b16 %v551, %v549
    %v730 = vpack.c.b16 %v552, %v550
    %v731 = vpack.c.b16 %v555, %v553
    %v732 = vpack.c.b16 %v556, %v554
    %v733 = vpack.c.b16 %v559, %v557
    %v734 = vpack.c.b16 %v560, %v558
    %v735 = vpack.c.b16 %v563, %v561
    %v736 = vpack.c.b16 %v564, %v562
    %v737 = vpack.c.b16 %v567, %v565
    %v738 = vpack.c.b16 %v568, %v566
    %v739 = vpack.c.b16 %v571, %v569
    %v740 = vpack.c.b16 %v572, %v570
    %v741 = vpack.c.b16 %v575, %v573
    %v742 = vpack.c.b16 %v576, %v574
    %v743 = vpack.c.b16 %v579, %v577
    %v744 = vpack.c.b16 %v580, %v578
    %v745 = vpack.c.b16 %v583, %v581
    %v746 = vpack.c.b16 %v584, %v582
    %v747 = vpack.c.b16 %v587, %v585
    %v748 = vpack.c.b16 %v588, %v586
    %v749 = vpack.c.b16 %v591, %v589
    %v750 = vpack.c.b16 %v592, %v590
    %v751 = vpack.c.b16 %v595, %v593
    %v752 = vpack.c.b16 %v596, %v594
    %v753 = vpack.c.b16 %v599, %v597
    %v754 = vpack.c.b16 %v600, %v598
    %v755 = vpack.c.b16 %v603, %v601
    %v756 = vpack.c.b16 %v604, %v602
    %v757 = vpack.c.b16 %v607, %v605
    %v758 = vpack.c.b16 %v608, %v606
    %v759 = vpack.c.b16 %v611, %v609
    %v760 = vpack.c.b16 %v612, %v610
    %v761 = vpack.c.b16 %v615, %v613
    %v762 = vpack.c.b16 %v616, %v614
    %v763 = vpack.c.b16 %v619, %v617
    %v764 = vpack.c.b16 %v620, %v618
    %v765 = vpack.c.b16 %v623, %v621
    %v766 = vpack.c.b16 %v624, %v622
    %v767 = vpack.c.b16 %v627, %v625
    %v768 = vpack.c.b16 %v628, %v626
    %v769 = vpack.c.b16 %v631, %v629
    %v770 = vpack.c.b16 %v632, %v630
    %v771 = vpack.c.b16 %v635, %v633
    %v772 = vpack.c.b16 %v636, %v634
    %v773 = vpack.c.b16 %v639, %v637
    %v774 = vpack.c.b16 %v640, %v638
    %v775 = vpack.c.b16 %v643, %v641
    %v776 = vpack.c.b16 %v644, %v642
    %v777 = vpack.c.b16 %v647, %v645
    %v778 = vpack.c.b16 %v648, %v646
    %v779 = vpack.c.b16 %v651, %v649
    %v780 = vpack.c.b16 %v652, %v650
    %909 = vmatprep.subr.bf16.mxu0 %v654
    %910 = vmatpush1.bf16.msra.mxu0 %v653
    %911 = vmatprep.subr.bf16.mxu0 %v656
    %912 = vmatpush1.bf16.msra.mxu0 %v655
    %913 = vmatprep.subr.bf16.mxu0 %v658
    %914 = vmatpush1.bf16.msra.mxu0 %v657
    %915 = vmatprep.subr.bf16.mxu0 %v660
    %916 = vmatpush1.bf16.msra.mxu0 %v659
    %917 = vmatprep.subr.bf16.mxu0 %v662
    %918 = vmatpush1.bf16.msra.mxu0 %v661
    %919 = vmatprep.subr.bf16.mxu0 %v664
    %920 = vmatpush1.bf16.msra.mxu0 %v663
    %921 = vmatprep.subr.bf16.mxu0 %v666
    %922 = vmatpush1.bf16.msra.mxu0 %v665
    %923 = vmatprep.subr.bf16.mxu0 %v668
    %924 = vmatpush1.bf16.msra.mxu0 %v667
    %925 = vmatprep.subr.bf16.mxu0 %v670
    %926 = vmatpush1.bf16.msra.mxu0 %v669
    %927 = vmatprep.subr.bf16.mxu0 %v672
    %928 = vmatpush1.bf16.msra.mxu0 %v671
    %929 = vmatprep.subr.bf16.mxu0 %v674
    %930 = vmatpush1.bf16.msra.mxu0 %v673
    %931 = vmatprep.subr.bf16.mxu0 %v676
    %932 = vmatpush1.bf16.msra.mxu0 %v675
    %933 = vmatprep.subr.bf16.mxu0 %v678
    %934 = vmatpush1.bf16.msra.mxu0 %v677
    %935 = vmatprep.subr.bf16.mxu0 %v680
    %936 = vmatpush1.bf16.msra.mxu0 %v679
    %937 = vmatprep.subr.bf16.mxu0 %v682
    %938 = vmatpush1.bf16.msra.mxu0 %v681
    %939 = vmatprep.subr.bf16.mxu0 %v684
    %940 = vmatpush1.bf16.msra.mxu0 %v683
    %941 = vmatprep.mubr.bf16.mxu0 %v134
    %942 = vmatmul.mubr.bf16.gmra.mrb[0].mxu0 %v133
    %v943 = vpop.f32.mrb[0].mxu0
    %v944 = vadd.f32 0.0, %v943
    %v945 = vpop.f32.mrb[0].mxu0
    %v946 = vadd.f32 0.0, %v945
    %v947 = vpop.f32.mrb[0].mxu0
    %v948 = vpop.f32.mrb[0].mxu0
    %949 = vdwg.mxu0
    %950 = vmatprep.subr.bf16.mxu0 %v686
    %951 = vmatpush1.bf16.msra.mxu0 %v685
    %952 = vmatprep.subr.bf16.mxu0 %v688
    %953 = vmatpush1.bf16.msra.mxu0 %v687
    %954 = vmatprep.subr.bf16.mxu0 %v690
    %955 = vmatpush1.bf16.msra.mxu0 %v689
    %956 = vmatprep.subr.bf16.mxu0 %v692
    %957 = vmatpush1.bf16.msra.mxu0 %v691
    %958 = vmatprep.subr.bf16.mxu0 %v694
    %959 = vmatpush1.bf16.msra.mxu0 %v693
    %960 = vmatprep.subr.bf16.mxu0 %v696
    %961 = vmatpush1.bf16.msra.mxu0 %v695
    %962 = vmatprep.subr.bf16.mxu0 %v698
    %963 = vmatpush1.bf16.msra.mxu0 %v697
    %964 = vmatprep.subr.bf16.mxu0 %v700
    %965 = vmatpush1.bf16.msra.mxu0 %v699
    %966 = vmatprep.subr.bf16.mxu0 %v702
    %967 = vmatpush1.bf16.msra.mxu0 %v701
    %968 = vmatprep.subr.bf16.mxu0 %v704
    %969 = vmatpush1.bf16.msra.mxu0 %v703
    %970 = vmatprep.subr.bf16.mxu0 %v706
    %971 = vmatpush1.bf16.msra.mxu0 %v705
    %972 = vmatprep.subr.bf16.mxu0 %v708
    %973 = vmatpush1.bf16.msra.mxu0 %v707
    %974 = vmatprep.subr.bf16.mxu0 %v710
    %975 = vmatpush1.bf16.msra.mxu0 %v709
    %976 = vmatprep.subr.bf16.mxu0 %v712
    %977 = vmatpush1.bf16.msra.mxu0 %v711
    %978 = vmatprep.subr.bf16.mxu0 %v714
    %979 = vmatpush1.bf16.msra.mxu0 %v713
    %980 = vmatprep.subr.bf16.mxu0 %v716
    %981 = vmatpush1.bf16.msra.mxu0 %v715
    %982 = vmatprep.mubr.bf16.mxu0 %v136
    %983 = vmatmul.mubr.bf16.gmra.mrb[0].mxu0 %v135
    %v984 = vpop.f32.mrb[0].mxu0
    %v985 = vadd.f32 %v944, %v984
    %v986 = vpop.f32.mrb[0].mxu0
    %v987 = vadd.f32 %v946, %v986
    %v988 = vpop.f32.mrb[0].mxu0
    %v989 = vpop.f32.mrb[0].mxu0
    %990 = vdwg.mxu0
    %991 = vmatprep.subr.bf16.mxu0 %v718
    %992 = vmatpush1.bf16.msra.mxu0 %v717
    %993 = vmatprep.subr.bf16.mxu0 %v720
    %994 = vmatpush1.bf16.msra.mxu0 %v719
    %995 = vmatprep.subr.bf16.mxu0 %v722
    %996 = vmatpush1.bf16.msra.mxu0 %v721
    %997 = vmatprep.subr.bf16.mxu0 %v724
    %998 = vmatpush1.bf16.msra.mxu0 %v723
    %999 = vmatprep.subr.bf16.mxu0 %v726
    %1000 = vmatpush1.bf16.msra.mxu0 %v725
    %1001 = vmatprep.subr.bf16.mxu0 %v728
    %1002 = vmatpush1.bf16.msra.mxu0 %v727
    %1003 = vmatprep.subr.bf16.mxu0 %v730
    %1004 = vmatpush1.bf16.msra.mxu0 %v729
    %1005 = vmatprep.subr.bf16.mxu0 %v732
    %1006 = vmatpush1.bf16.msra.mxu0 %v731
    %1007 = vmatprep.subr.bf16.mxu0 %v734
    %1008 = vmatpush1.bf16.msra.mxu0 %v733
    %1009 = vmatprep.subr.bf16.mxu0 %v736
    %1010 = vmatpush1.bf16.msra.mxu0 %v735
    %1011 = vmatprep.subr.bf16.mxu0 %v738
    %1012 = vmatpush1.bf16.msra.mxu0 %v737
    %1013 = vmatprep.subr.bf16.mxu0 %v740
    %1014 = vmatpush1.bf16.msra.mxu0 %v739
    %1015 = vmatprep.subr.bf16.mxu0 %v742
    %1016 = vmatpush1.bf16.msra.mxu0 %v741
    %1017 = vmatprep.subr.bf16.mxu0 %v744
    %1018 = vmatpush1.bf16.msra.mxu0 %v743
    %1019 = vmatprep.subr.bf16.mxu0 %v746
    %1020 = vmatpush1.bf16.msra.mxu0 %v745
    %1021 = vmatprep.subr.bf16.mxu0 %v748
    %1022 = vmatpush1.bf16.msra.mxu0 %v747
    %1023 = vmatprep.mubr.bf16.mxu0 %v138
    %1024 = vmatmul.mubr.bf16.gmra.mrb[0].mxu0 %v137
    %v1025 = vpop.f32.mrb[0].mxu0
    %v1026 = vadd.f32 %v985, %v1025
    %v1027 = vpop.f32.mrb[0].mxu0
    %v1028 = vadd.f32 %v987, %v1027
    %v1029 = vpop.f32.mrb[0].mxu0
    %v1030 = vpop.f32.mrb[0].mxu0
    %1031 = vdwg.mxu0
    %1032 = vmatprep.subr.bf16.mxu0 %v750
    %1033 = vmatpush1.bf16.msra.mxu0 %v749
    %1034 = vmatprep.subr.bf16.mxu0 %v752
    %1035 = vmatpush1.bf16.msra.mxu0 %v751
    %1036 = vmatprep.subr.bf16.mxu0 %v754
    %1037 = vmatpush1.bf16.msra.mxu0 %v753
    %1038 = vmatprep.subr.bf16.mxu0 %v756
    %1039 = vmatpush1.bf16.msra.mxu0 %v755
    %1040 = vmatprep.subr.bf16.mxu0 %v758
    %1041 = vmatpush1.bf16.msra.mxu0 %v757
    %1042 = vmatprep.subr.bf16.mxu0 %v760
    %1043 = vmatpush1.bf16.msra.mxu0 %v759
    %1044 = vmatprep.subr.bf16.mxu0 %v762
    %1045 = vmatpush1.bf16.msra.mxu0 %v761
    %1046 = vmatprep.subr.bf16.mxu0 %v764
    %1047 = vmatpush1.bf16.msra.mxu0 %v763
    %1048 = vmatprep.subr.bf16.mxu0 %v766
    %1049 = vmatpush1.bf16.msra.mxu0 %v765
    %1050 = vmatprep.subr.bf16.mxu0 %v768
    %1051 = vmatpush1.bf16.msra.mxu0 %v767
    %1052 = vmatprep.subr.bf16.mxu0 %v770
    %1053 = vmatpush1.bf16.msra.mxu0 %v769
    %1054 = vmatprep.subr.bf16.mxu0 %v772
    %1055 = vmatpush1.bf16.msra.mxu0 %v771
    %1056 = vmatprep.subr.bf16.mxu0 %v774
    %1057 = vmatpush1.bf16.msra.mxu0 %v773
    %1058 = vmatprep.subr.bf16.mxu0 %v776
    %1059 = vmatpush1.bf16.msra.mxu0 %v775
    %1060 = vmatprep.subr.bf16.mxu0 %v778
    %1061 = vmatpush1.bf16.msra.mxu0 %v777
    %1062 = vmatprep.subr.bf16.mxu0 %v780
    %1063 = vmatpush1.bf16.msra.mxu0 %v779
    %1064 = vmatprep.mubr.bf16.mxu0 %v140
    %1065 = vmatmul.mubr.bf16.gmra.mrb[0].mxu0 %v139
    %v1066 = vpop.f32.mrb[0].mxu0
    %v1067 = vadd.f32 %v1026, %v1066
    %v1068 = vpop.f32.mrb[0].mxu0
    %v1069 = vadd.f32 %v1028, %v1068
    %v1070 = vpop.f32.mrb[0].mxu0
    %v1071 = vpop.f32.mrb[0].mxu0
    %1072 = vdwg.mxu0
    %v1075 = vcombine.low %v1067, %v1069
    %v1077 = vunpack.c.l.s4 1983009808
    %v1078 = vunpack.c.0.s8 %v1077
    %v1079 = vlaneseq
    %v1080 = vshrl.u32 %v1079, 7
    %v1081 = vsub.s32 %v1078, %v1080
    %v1082 = vrot.slane %v1075, %v1081
    %v1084 = vadd.f32 %v88, %v1082
    %1085 = vst [vmem:[#allocation2] sm:$0xf] %v1084
    // Predicated region
    $region50: #{tpu_custom_call.1} parent=1 // pred_check
      %p1086 = pneg %p81
    $region51: #{tpu_custom_call.1} parent=1 // pred_check_branch
      %1088 = sbr.rel (%p1086) target = $region53
    $region52: #{tpu_custom_call.1} parent=1 // pred_region
      %v1089 = vld [vmem:[#allocation2] sm:$0xf]
      %v1090 = vld [vmem:[%s2] sm:$0x3]
      %v1092 = vlaneseq
      %v1093 = vshrl.u32 %v1092, 7
      %v1094 = vsub.s32 0, %v1093
      %v1095 = vrot.slane %v1090, %v1094
      %v1096 = vlaneseq
      %v1097 = vshrl.u32 %v1096, 7
      %v1098 = vsub.s32 1, %v1097
      %v1099 = vrot.slane %v1090, %v1098
      %v1100 = vcombine.low %v1095, %v1099
      %v1102 = vunpack.c.l.s4 1983009808
      %v1103 = vunpack.c.0.s8 %v1102
      %v1104 = vlaneseq
      %v1105 = vshrl.u32 %v1104, 7
      %v1106 = vsub.s32 %v1103, %v1105
      %v1107 = vrot.slane %v1100, %v1106
      %v1109 = vadd.f32 %v1089, %v1107
      %v1110 = vmax.f32 %v1109, 0.0
      %v1113 = vunpack.c.l.s4 1983009808
      %v1114 = vunpack.c.0.s8 %v1113
      %v1115 = vlaneseq
      %v1116 = vshrl.u32 %v1115, 7
      %v1117 = vsub.s32 %v1114, %v1116
      %v1118 = vrot.slane %v1110, %v1117
      %v1119 = vcombine.high %v1118, %v1118
      %v1122 = vpack.c.bf16 %v1118, %v1118
      %v1123 = vpack.c.bf16 %v1119, %v1119
      %v1124 = vld [vmem:[#allocation8] sm:$0xff]
      %v1125 = vld [vmem:[#allocation8 + $0x8] sm:$0xff]
      %v1126 = vld [vmem:[#allocation8 + $0x10] sm:$0xff]
      %v1127 = vld [vmem:[#allocation8 + $0x18] sm:$0xff]
      %v1128 = vld [vmem:[#allocation8 + $0x20] sm:$0xff]
      %v1129 = vld [vmem:[#allocation8 + $0x28] sm:$0xff]
      %v1130 = vld [vmem:[#allocation8 + $0x30] sm:$0xff]
      %v1131 = vld [vmem:[#allocation8 + $0x38] sm:$0xff]
      %v1132 = vld [vmem:[#allocation8 + $0x40] sm:$0xff]
      %v1133 = vld [vmem:[#allocation8 + $0x48] sm:$0xff]
      %v1134 = vld [vmem:[#allocation8 + $0x50] sm:$0xff]
      %v1135 = vld [vmem:[#allocation8 + $0x58] sm:$0xff]
      %v1136 = vld [vmem:[#allocation8 + $0x60] sm:$0xff]
      %v1137 = vld [vmem:[#allocation8 + $0x68] sm:$0xff]
      %v1138 = vld [vmem:[#allocation8 + $0x70] sm:$0xff]
      %v1139 = vld [vmem:[#allocation8 + $0x78] sm:$0xff]
      %v1140 = vld [vmem:[#allocation8 + $0x80] sm:$0xff]
      %v1141 = vld [vmem:[#allocation8 + $0x88] sm:$0xff]
      %v1142 = vld [vmem:[#allocation8 + $0x90] sm:$0xff]
      %v1143 = vld [vmem:[#allocation8 + $0x98] sm:$0xff]
      %v1144 = vld [vmem:[#allocation8 + $0xa0] sm:$0xff]
      %v1145 = vld [vmem:[#allocation8 + $0xa8] sm:$0xff]
      %v1146 = vld [vmem:[#allocation8 + $0xb0] sm:$0xff]
      %v1147 = vld [vmem:[#allocation8 + $0xb8] sm:$0xff]
      %v1148 = vld [vmem:[#allocation8 + $0xc0] sm:$0xff]
      %v1149 = vld [vmem:[#allocation8 + $0xc8] sm:$0xff]
      %v1150 = vld [vmem:[#allocation8 + $0xd0] sm:$0xff]
      %v1151 = vld [vmem:[#allocation8 + $0xd8] sm:$0xff]
      %v1152 = vld [vmem:[#allocation8 + $0xe0] sm:$0xff]
      %v1153 = vld [vmem:[#allocation8 + $0xe8] sm:$0xff]
      %v1154 = vld [vmem:[#allocation8 + $0xf0] sm:$0xff]
      %v1155 = vld [vmem:[#allocation8 + $0xf8] sm:$0xff]
      %v1156 = vld [vmem:[%s4] sm:$0x3]
      %v1158 = vlaneseq
      %v1159 = vshrl.u32 %v1158, 7
      %v1160 = vsub.s32 0, %v1159
      %v1161 = vrot.slane %v1156, %v1160
      %v1162 = vlaneseq
      %v1163 = vshrl.u32 %v1162, 7
      %v1164 = vsub.s32 1, %v1163
      %v1165 = vrot.slane %v1156, %v1164
      %v1200 = vunpack.c.l.b16 %v1124
      %v1201 = vunpack.c.h.b16 %v1124
      %v1202 = vunpack.c.l.b16 %v1125
      %v1203 = vunpack.c.h.b16 %v1125
      %v1204 = vunpack.c.l.b16 %v1126
      %v1205 = vunpack.c.h.b16 %v1126
      %v1206 = vunpack.c.l.b16 %v1127
      %v1207 = vunpack.c.h.b16 %v1127
      %v1208 = vunpack.c.l.b16 %v1128
      %v1209 = vunpack.c.h.b16 %v1128
      %v1210 = vunpack.c.l.b16 %v1129
      %v1211 = vunpack.c.h.b16 %v1129
      %v1212 = vunpack.c.l.b16 %v1130
      %v1213 = vunpack.c.h.b16 %v1130
      %v1214 = vunpack.c.l.b16 %v1131
      %v1215 = vunpack.c.h.b16 %v1131
      %v1216 = vunpack.c.l.b16 %v1132
      %v1217 = vunpack.c.h.b16 %v1132
      %v1218 = vunpack.c.l.b16 %v1133
      %v1219 = vunpack.c.h.b16 %v1133
      %v1220 = vunpack.c.l.b16 %v1134
      %v1221 = vunpack.c.h.b16 %v1134
      %v1222 = vunpack.c.l.b16 %v1135
      %v1223 = vunpack.c.h.b16 %v1135
      %v1224 = vunpack.c.l.b16 %v1136
      %v1225 = vunpack.c.h.b16 %v1136
      %v1226 = vunpack.c.l.b16 %v1137
      %v1227 = vunpack.c.h.b16 %v1137
      %v1228 = vunpack.c.l.b16 %v1138
      %v1229 = vunpack.c.h.b16 %v1138
      %v1230 = vunpack.c.l.b16 %v1139
      %v1231 = vunpack.c.h.b16 %v1139
      %v1232 = vunpack.c.l.b16 %v1140
      %v1233 = vunpack.c.h.b16 %v1140
      %v1234 = vunpack.c.l.b16 %v1141
      %v1235 = vunpack.c.h.b16 %v1141
      %v1236 = vunpack.c.l.b16 %v1142
      %v1237 = vunpack.c.h.b16 %v1142
      %v1238 = vunpack.c.l.b16 %v1143
      %v1239 = vunpack.c.h.b16 %v1143
      %v1240 = vunpack.c.l.b16 %v1144
      %v1241 = vunpack.c.h.b16 %v1144
      %v1242 = vunpack.c.l.b16 %v1145
      %v1243 = vunpack.c.h.b16 %v1145
      %v1244 = vunpack.c.l.b16 %v1146
      %v1245 = vunpack.c.h.b16 %v1146
      %v1246 = vunpack.c.l.b16 %v1147
      %v1247 = vunpack.c.h.b16 %v1147
      %v1248 = vunpack.c.l.b16 %v1148
      %v1249 = vunpack.c.h.b16 %v1148
      %v1250 = vunpack.c.l.b16 %v1149
      %v1251 = vunpack.c.h.b16 %v1149
      %v1252 = vunpack.c.l.b16 %v1150
      %v1253 = vunpack.c.h.b16 %v1150
      %v1254 = vunpack.c.l.b16 %v1151
      %v1255 = vunpack.c.h.b16 %v1151
      %v1256 = vunpack.c.l.b16 %v1152
      %v1257 = vunpack.c.h.b16 %v1152
      %v1258 = vunpack.c.l.b16 %v1153
      %v1259 = vunpack.c.h.b16 %v1153
      %v1260 = vunpack.c.l.b16 %v1154
      %v1261 = vunpack.c.h.b16 %v1154
      %v1262 = vunpack.c.l.b16 %v1155
      %v1263 = vunpack.c.h.b16 %v1155
      %v1264 = vpack.c.b16 %v1202, %v1200
      %v1265 = vpack.c.b16 %v1203, %v1201
      %v1266 = vpack.c.b16 %v1206, %v1204
      %v1267 = vpack.c.b16 %v1207, %v1205
      %v1268 = vpack.c.b16 %v1210, %v1208
      %v1269 = vpack.c.b16 %v1211, %v1209
      %v1270 = vpack.c.b16 %v1214, %v1212
      %v1271 = vpack.c.b16 %v1215, %v1213
      %v1272 = vpack.c.b16 %v1218, %v1216
      %v1273 = vpack.c.b16 %v1219, %v1217
      %v1274 = vpack.c.b16 %v1222, %v1220
      %v1275 = vpack.c.b16 %v1223, %v1221
      %v1276 = vpack.c.b16 %v1226, %v1224
      %v1277 = vpack.c.b16 %v1227, %v1225
      %v1278 = vpack.c.b16 %v1230, %v1228
      %v1279 = vpack.c.b16 %v1231, %v1229
      %v1280 = vpack.c.b16 %v1234, %v1232
      %v1281 = vpack.c.b16 %v1235, %v1233
      %v1282 = vpack.c.b16 %v1238, %v1236
      %v1283 = vpack.c.b16 %v1239, %v1237
      %v1284 = vpack.c.b16 %v1242, %v1240
      %v1285 = vpack.c.b16 %v1243, %v1241
      %v1286 = vpack.c.b16 %v1246, %v1244
      %v1287 = vpack.c.b16 %v1247, %v1245
      %v1288 = vpack.c.b16 %v1250, %v1248
      %v1289 = vpack.c.b16 %v1251, %v1249
      %v1290 = vpack.c.b16 %v1254, %v1252
      %v1291 = vpack.c.b16 %v1255, %v1253
      %v1292 = vpack.c.b16 %v1258, %v1256
      %v1293 = vpack.c.b16 %v1259, %v1257
      %v1294 = vpack.c.b16 %v1262, %v1260
      %v1295 = vpack.c.b16 %v1263, %v1261
      %1328 = vmatprep.subr.bf16.mxu0 %v1265
      %1329 = vmatpush1.bf16.msra.mxu0 %v1264
      %1330 = vmatprep.subr.bf16.mxu0 %v1267
      %1331 = vmatpush1.bf16.msra.mxu0 %v1266
      %1332 = vmatprep.subr.bf16.mxu0 %v1269
      %1333 = vmatpush1.bf16.msra.mxu0 %v1268
      %1334 = vmatprep.subr.bf16.mxu0 %v1271
      %1335 = vmatpush1.bf16.msra.mxu0 %v1270
      %1336 = vmatprep.subr.bf16.mxu0 %v1273
      %1337 = vmatpush1.bf16.msra.mxu0 %v1272
      %1338 = vmatprep.subr.bf16.mxu0 %v1275
      %1339 = vmatpush1.bf16.msra.mxu0 %v1274
      %1340 = vmatprep.subr.bf16.mxu0 %v1277
      %1341 = vmatpush1.bf16.msra.mxu0 %v1276
      %1342 = vmatprep.subr.bf16.mxu0 %v1279
      %1343 = vmatpush1.bf16.msra.mxu0 %v1278
      %1344 = vmatprep.subr.bf16.mxu0 %v1281
      %1345 = vmatpush1.bf16.msra.mxu0 %v1280
      %1346 = vmatprep.subr.bf16.mxu0 %v1283
      %1347 = vmatpush1.bf16.msra.mxu0 %v1282
      %1348 = vmatprep.subr.bf16.mxu0 %v1285
      %1349 = vmatpush1.bf16.msra.mxu0 %v1284
      %1350 = vmatprep.subr.bf16.mxu0 %v1287
      %1351 = vmatpush1.bf16.msra.mxu0 %v1286
      %1352 = vmatprep.subr.bf16.mxu0 %v1289
      %1353 = vmatpush1.bf16.msra.mxu0 %v1288
      %1354 = vmatprep.subr.bf16.mxu0 %v1291
      %1355 = vmatpush1.bf16.msra.mxu0 %v1290
      %1356 = vmatprep.subr.bf16.mxu0 %v1293
      %1357 = vmatpush1.bf16.msra.mxu0 %v1292
      %1358 = vmatprep.subr.bf16.mxu0 %v1295
      %1359 = vmatpush1.bf16.msra.mxu0 %v1294
      %1360 = vmatprep.mubr.bf16.mxu0 %v1123
      %1361 = vmatmul.mubr.bf16.gmra.mrb[0].mxu0 %v1122
      %v1362 = vpop.f32.mrb[0].mxu0
      %v1363 = vadd.f32 %v1161, %v1362
      %v1364 = vpop.f32.mrb[0].mxu0
      %v1365 = vadd.f32 %v1165, %v1364
      %v1366 = vpop.f32.mrb[0].mxu0
      %v1367 = vpop.f32.mrb[0].mxu0
      %1368 = vdwg.mxu0
      %v1369 = vmax.f32 %v1363, 0.0
      %v1370 = vmax.f32 %v1365, 0.0
      %v1371 = vpack.c.bf16 %v1369, %v1369
      %v1372 = vpack.c.bf16 %v1370, %v1370
      %v1373 = vld [vmem:[#allocation9] sm:$0xf]
      %v1374 = vld [vmem:[#allocation9 + $0x4] sm:$0xf]
      %v1375 = vld [vmem:[#allocation9 + $0x8] sm:$0xf]
      %v1376 = vld [vmem:[#allocation9 + $0xc] sm:$0xf]
      %v1377 = vld [vmem:[#allocation9 + $0x10] sm:$0xf]
      %v1378 = vld [vmem:[#allocation9 + $0x14] sm:$0xf]
      %v1379 = vld [vmem:[#allocation9 + $0x18] sm:$0xf]
      %v1380 = vld [vmem:[#allocation9 + $0x1c] sm:$0xf]
      %v1381 = vld [vmem:[#allocation9 + $0x20] sm:$0xf]
      %v1382 = vld [vmem:[#allocation9 + $0x24] sm:$0xf]
      %v1383 = vld [vmem:[#allocation9 + $0x28] sm:$0xf]
      %v1384 = vld [vmem:[#allocation9 + $0x2c] sm:$0xf]
      %v1385 = vld [vmem:[#allocation9 + $0x30] sm:$0xf]
      %v1386 = vld [vmem:[#allocation9 + $0x34] sm:$0xf]
      %v1387 = vld [vmem:[#allocation9 + $0x38] sm:$0xf]
      %v1388 = vld [vmem:[#allocation9 + $0x3c] sm:$0xf]
      %v1389 = vld [vmem:[#allocation9 + $0x40] sm:$0xf]
      %v1390 = vld [vmem:[#allocation9 + $0x44] sm:$0xf]
      %v1391 = vld [vmem:[#allocation9 + $0x48] sm:$0xf]
      %v1392 = vld [vmem:[#allocation9 + $0x4c] sm:$0xf]
      %v1393 = vld [vmem:[#allocation9 + $0x50] sm:$0xf]
      %v1394 = vld [vmem:[#allocation9 + $0x54] sm:$0xf]
      %v1395 = vld [vmem:[#allocation9 + $0x58] sm:$0xf]
      %v1396 = vld [vmem:[#allocation9 + $0x5c] sm:$0xf]
      %v1397 = vld [vmem:[#allocation9 + $0x60] sm:$0xf]
      %v1398 = vld [vmem:[#allocation9 + $0x64] sm:$0xf]
      %v1399 = vld [vmem:[#allocation9 + $0x68] sm:$0xf]
      %v1400 = vld [vmem:[#allocation9 + $0x6c] sm:$0xf]
      %v1401 = vld [vmem:[#allocation9 + $0x70] sm:$0xf]
      %v1402 = vld [vmem:[#allocation9 + $0x74] sm:$0xf]
      %v1403 = vld [vmem:[#allocation9 + $0x78] sm:$0xf]
      %v1404 = vld [vmem:[#allocation9 + $0x7c] sm:$0xf]
      %v1405 = vld [vmem:[%s6] sm:$0x1]
      %v1407 = vlaneseq
      %v1408 = vshrl.u32 %v1407, 7
      %v1409 = vsub.s32 0, %v1408
      %v1410 = vrot.slane %v1405, %v1409
      %v1444 = vunpack.c.l.b16 %v1373
      %v1445 = vunpack.c.l.b16 %v1374
      %v1446 = vunpack.c.l.b16 %v1375
      %v1447 = vunpack.c.l.b16 %v1376
      %v1448 = vunpack.c.l.b16 %v1377
      %v1449 = vunpack.c.l.b16 %v1378
      %v1450 = vunpack.c.l.b16 %v1379
      %v1451 = vunpack.c.l.b16 %v1380
      %v1452 = vunpack.c.l.b16 %v1381
      %v1453 = vunpack.c.l.b16 %v1382
      %v1454 = vunpack.c.l.b16 %v1383
      %v1455 = vunpack.c.l.b16 %v1384
      %v1456 = vunpack.c.l.b16 %v1385
      %v1457 = vunpack.c.l.b16 %v1386
      %v1458 = vunpack.c.l.b16 %v1387
      %v1459 = vunpack.c.l.b16 %v1388
      %v1460 = vunpack.c.l.b16 %v1389
      %v1461 = vunpack.c.l.b16 %v1390
      %v1462 = vunpack.c.l.b16 %v1391
      %v1463 = vunpack.c.l.b16 %v1392
      %v1464 = vunpack.c.l.b16 %v1393
      %v1465 = vunpack.c.l.b16 %v1394
      %v1466 = vunpack.c.l.b16 %v1395
      %v1467 = vunpack.c.l.b16 %v1396
      %v1468 = vunpack.c.l.b16 %v1397
      %v1469 = vunpack.c.l.b16 %v1398
      %v1470 = vunpack.c.l.b16 %v1399
      %v1471 = vunpack.c.l.b16 %v1400
      %v1472 = vunpack.c.l.b16 %v1401
      %v1473 = vunpack.c.l.b16 %v1402
      %v1474 = vunpack.c.l.b16 %v1403
      %v1475 = vunpack.c.l.b16 %v1404
      %v1476 = vpack.c.b16 %v1445, %v1444
      %v1477 = vpack.c.b16 %v1447, %v1446
      %v1478 = vpack.c.b16 %v1449, %v1448
      %v1479 = vpack.c.b16 %v1451, %v1450
      %v1480 = vpack.c.b16 %v1453, %v1452
      %v1481 = vpack.c.b16 %v1455, %v1454
      %v1482 = vpack.c.b16 %v1457, %v1456
      %v1483 = vpack.c.b16 %v1459, %v1458
      %v1484 = vpack.c.b16 %v1461, %v1460
      %v1485 = vpack.c.b16 %v1463, %v1462
      %v1486 = vpack.c.b16 %v1465, %v1464
      %v1487 = vpack.c.b16 %v1467, %v1466
      %v1488 = vpack.c.b16 %v1469, %v1468
      %v1489 = vpack.c.b16 %v1471, %v1470
      %v1490 = vpack.c.b16 %v1473, %v1472
      %v1491 = vpack.c.b16 %v1475, %v1474
      %1508 = vmatprep.subr.bf16.mxu0 0
      %1509 = vmatpush1.bf16.msra.mxu0 %v1476
      %1510 = vmatprep.subr.bf16.mxu0 0
      %1511 = vmatpush1.bf16.msra.mxu0 %v1477
      %1512 = vmatprep.subr.bf16.mxu0 0
      %1513 = vmatpush1.bf16.msra.mxu0 %v1478
      %1514 = vmatprep.subr.bf16.mxu0 0
      %1515 = vmatpush1.bf16.msra.mxu0 %v1479
      %1516 = vmatprep.subr.bf16.mxu0 0
      %1517 = vmatpush1.bf16.msra.mxu0 %v1480
      %1518 = vmatprep.subr.bf16.mxu0 0
      %1519 = vmatpush1.bf16.msra.mxu0 %v1481
      %1520 = vmatprep.subr.bf16.mxu0 0
      %1521 = vmatpush1.bf16.msra.mxu0 %v1482
      %1522 = vmatprep.subr.bf16.mxu0 0
      %1523 = vmatpush1.bf16.msra.mxu0 %v1483
      %1524 = vmatprep.subr.bf16.mxu0 0
      %1525 = vmatpush1.bf16.msra.mxu0 %v1484
      %1526 = vmatprep.subr.bf16.mxu0 0
      %1527 = vmatpush1.bf16.msra.mxu0 %v1485
      %1528 = vmatprep.subr.bf16.mxu0 0
      %1529 = vmatpush1.bf16.msra.mxu0 %v1486
      %1530 = vmatprep.subr.bf16.mxu0 0
      %1531 = vmatpush1.bf16.msra.mxu0 %v1487
      %1532 = vmatprep.subr.bf16.mxu0 0
      %1533 = vmatpush1.bf16.msra.mxu0 %v1488
      %1534 = vmatprep.subr.bf16.mxu0 0
      %1535 = vmatpush1.bf16.msra.mxu0 %v1489
      %1536 = vmatprep.subr.bf16.mxu0 0
      %1537 = vmatpush1.bf16.msra.mxu0 %v1490
      %1538 = vmatprep.subr.bf16.mxu0 0
      %1539 = vmatpush1.bf16.msra.mxu0 %v1491
      %1540 = vmatprep.mubr.bf16.mxu0 %v1372
      %1541 = vmatmul.mubr.bf16.gmra.mrb[0].mxu0 %v1371
      %v1542 = vpop.f32.mrb[0].mxu0
      %v1543 = vadd.f32 %v1410, %v1542
      %v1544 = vpop.f32.mrb[0].mxu0
      %v1545 = vpop.f32.mrb[0].mxu0
      %v1546 = vpop.f32.mrb[0].mxu0
      %1547 = vdwg.mxu0
      %1548 = vst [vmem:[#allocation11] sm:$0x3] %v1543
    $region53: #{tpu_custom_call.1} parent=1 // pred_fallthru
      _
    // Predicated region
    $region54: #{tpu_custom_call.1} parent=1 // pred_check
      _
    $region55: #{tpu_custom_call.1} parent=1 // pred_check_branch
      %1550 = sbr.rel (0) target = $region57
    $region56: #{tpu_custom_call.1} parent=1 // pred_region
      %s1552 = ssub.s32 32, 32
      %1553 = vsyncadd [#allocation5], %s1552
      %s1555 = sshll.u32 [#allocation11], 4
      %s1556 = int_to_ptr.vmem [resolvable:$true] %s1555
      %1558 = dma.vmem_to_hbm [thread:$0]  %s1556, 32, %s7, [#allocation5]
    $region57: #{tpu_custom_call.1} parent=1 // pred_fallthru
      _
    // Predicated region
    $region58: #{tpu_custom_call.1} parent=1 // pred_check
      _
    $region59: #{tpu_custom_call.1} parent=1 // pred_check_branch
      %1560 = sbr.rel (0) target = $region61
    $region60: #{tpu_custom_call.1} parent=1 // pred_region
      %1561 = dma.done [#allocation5], 32
    $region61: #{tpu_custom_call.1} parent=1 // pred_fallthru
      _
    %1562 = vsyncpa [#allocation4], 1
    %1563 = vsyncpa [#allocation7], 1
    %1564 = vsyncpa [#allocation10], 1
    %1565 = vsyncpa [#allocation5], 1

</llo_original>
